<compile_context>
chip_gen: v7x
topology: tpu7x:2x2x1
jax: 0.10.0
libtpu: 0.0.40
codegen_flags: <defaults>
</compile_context>

<pallas_src>
import jax
import jax.numpy as jnp
from jax.experimental import pallas as pl
from jax.experimental.pallas import tpu as pltpu

_LANE = 128
_SUBLANE = 8
_NEG_BIG = -1e30  # bias for padded logit columns -> exp underflows to exactly 0


def _round_up(n, m):
    return ((n + m - 1) // m) * m


def _make_mlp_kernel(layer_meta):
    """Builds the fused MLP kernel.

    layer_meta: tuple of (row_offset, d_in, d_out) static python ints into the
    packed parameter buffer.  For layer i:
        packed[row_offset : row_offset + d_in, :d_out]  -> W_i   (bf16)
        packed[row_offset + d_in,               :d_out] -> b_i   (bf16)
    Hidden layers: ReLU after bias add (Dropout is identity in eval mode).
    Last layer: d_out is the lane-padded class width; padded columns carry a
    -1e30 bias, so the row-wise softmax over the padded width is exact.
    """
    n_layers = len(layer_meta)

    def kernel(x_ref, pk_ref, out_ref):
        h = x_ref[...]                                   # bf16 feeds the MXU
        logits = None
        for li, (r0, d_in, d_out) in enumerate(layer_meta):
            w = pk_ref[r0:r0 + d_in, 0:d_out]                            # bf16
            b = pk_ref[r0 + d_in:r0 + d_in + 1, 0:d_out].astype(jnp.float32)
            acc = jnp.dot(h, w, preferred_element_type=jnp.float32) + b  # f32
            if li < n_layers - 1:
                acc = jnp.maximum(acc, 0.0)              # ReLU in f32 (VPU)
                # TODO(synk): nn.Dropout(0.2) is identity in eval mode; not applied.
                h = acc.astype(jnp.bfloat16)             # re-feed MXU in bf16
            else:
                logits = acc                             # (TB, out_width) f32

        # torch.softmax(logits, dim=1), numerically stable; divide on the EUP.
        m = jnp.max(logits, axis=1, keepdims=True)
        e = jnp.exp(logits - m)
        s = jnp.sum(e, axis=1, keepdims=True)
        out_ref[...] = (e * pl.reciprocal(s, approx=True)).astype(out_ref.dtype)

    return kernel


def pack_params(params):
    """Packs [(W(in,out) f32, b(1,out) f32), ...] into one bf16 buffer.

    Layout per layer (stacked vertically, each block row-padded to a multiple
    of 8): d_in rows of W, then 1 bias row.  All blocks share one column width
    (max layer width, rounded up to 128).  The final layer's weight padding
    columns are zero and its bias padding columns are -1e30 (lane-dense,
    softmax-safe logits).  Returns (packed_bf16, layer_meta).
    """
    n_layers = len(params)
    col = _round_up(max(w.shape[1] for w, _ in params), _LANE)

    blocks, meta, r0 = [], [], 0
    for li, (w, b) in enumerate(params):
        d_in, d_out = w.shape
        last = li == n_layers - 1
        w_pad = jnp.zeros((d_in, col), jnp.float32).at[:, :d_out].set(w)
        fill = _NEG_BIG if last else 0.0
        b_pad = jnp.full((1, col), fill, jnp.float32).at[:, :d_out].set(b)
        blk = jnp.concatenate([w_pad, b_pad], axis=0)            # (d_in+1, col)
        rows = _round_up(d_in + 1, _SUBLANE)
        if rows > d_in + 1:
            blk = jnp.concatenate(
                [blk, jnp.zeros((rows - (d_in + 1), col), jnp.float32)], axis=0)
        blocks.append(blk)
        meta.append((r0, d_in, col if last else d_out))
        r0 += rows

    packed = jnp.concatenate(blocks, axis=0).astype(jnp.bfloat16)
    return packed, tuple(meta)


def mlp_forward(x, params, *, block_b=512):
    """x: (B, input_dims) float32.  params: list of (W (in,out), b (1,out)) f32.

    Returns softmax probabilities (B, n_class) float32.
    """
    B, d_in0 = x.shape
    n_class = params[-1][0].shape[1]

    packed, meta = pack_params(params)
    out_width = packed.shape[1]                  # lane-dense (multiple of 128)

    x_bf16 = x.astype(jnp.bfloat16)              # bf16 MXU feed, halves DMA bytes

    # Batch tile: whole batch if small, otherwise 512-row blocks (multiple of
    # 8, fits comfortably in v7x's smaller VMEM even with double buffering).
    tb = B if B <= block_b else block_b
    grid = (pl.cdiv(B, tb),)

    kernel = _make_mlp_kernel(meta)

    out = pl.pallas_call(
        kernel,
        out_shape=jax.ShapeDtypeStruct((B, out_width), jnp.float32),
        grid=grid,
        in_specs=[
            pl.BlockSpec((tb, d_in0), lambda i: (i, 0)),       # batch-tiled x
            pl.BlockSpec(packed.shape, lambda i: (0, 0)),      # resident params
        ],
        out_specs=pl.BlockSpec((tb, out_width), lambda i: (i, 0)),
        compiler_params=pltpu.CompilerParams(
            dimension_semantics=("parallel",),   # v7x: shard batch over 2 TCs
        ),
    )(x_bf16, packed)

    return out[:, :n_class]


def init_mlp_params(key, input_dims, n_hiddens, n_class):
    """Deterministic synthetic parameter init mirroring the module's shapes."""
    if isinstance(n_hiddens, int):
        n_hiddens = [n_hiddens]
    dims = [input_dims] + list(n_hiddens) + [n_class]
    params = []
    for i in range(len(dims) - 1):
        d_in, d_out = dims[i], dims[i + 1]
        key, kw, kb = jax.random.split(key, 3)
        bound = 1.0 / jnp.sqrt(jnp.float32(d_in))
        # Stored already transposed vs. PyTorch: (in_features, out_features).
        w = jax.random.uniform(kw, (d_in, d_out), jnp.float32, -bound, bound)
        b = jax.random.uniform(kb, (1, d_out), jnp.float32, -bound, bound)
        params.append((w, b))
    return params


def mlp_reference(x, params):
    """Pure-JAX reference mirroring the kernel's bf16-MXU / f32-accumulate numerics."""
    h = x.astype(jnp.bfloat16)
    n = len(params)
    logits = None
    for li, (w, b) in enumerate(params):
        w16 = w.astype(jnp.bfloat16)
        b32 = b.astype(jnp.bfloat16).astype(jnp.float32)
        acc = jnp.dot(h, w16, preferred_element_type=jnp.float32) + b32
        if li < n - 1:
            acc = jnp.maximum(acc, 0.0)
            h = acc.astype(jnp.bfloat16)
        else:
            logits = acc
    return jax.nn.softmax(logits, axis=1)


if __name__ == "__main__":
    key = jax.random.PRNGKey(0)

    batch = 8
    input_dims = 32
    n_hiddens = [64, 32]
    n_class = 16

    key, kx = jax.random.split(key)
    x = jax.random.normal(kx, (batch, input_dims), jnp.float32)
    params = init_mlp_params(key, input_dims, n_hiddens, n_class)

    out = jax.block_until_ready(mlp_forward(x, params))
    ref = mlp_reference(x, params)

    assert out.shape == (batch, n_class)
    # Tolerance accounts for the EUP approximate reciprocal and any
    # accumulation-order differences vs. the XLA bf16 dot in the reference.
    assert jnp.allclose(out, ref, atol=5e-3, rtol=0.0), "mismatch vs reference"
    # rows of a softmax sum to 1
    assert jnp.allclose(jnp.sum(out, axis=1), jnp.ones((batch,)), atol=5e-3)

    print("KERNEL_OK")
</pallas_src>

<mosaic_0001>
module attributes {stable_mosaic.version = 11 : i64} {
  func.func @kernel(%arg0: i32, %arg1: memref<8x32xbf16, #tpu.memory_space<vmem>>, %arg2: memref<152x128xbf16, #tpu.memory_space<vmem>>, %arg3: memref<8x128xf32, #tpu.memory_space<vmem>>) attributes {dimension_semantics = [#tpu.dimension_semantics<parallel>], iteration_bounds = array<i64: 1>, scalar_prefetch = 0 : i64, scratch_operands = 0 : i64, tpu.core_type = #tpu.core_type<tc>, window_params = [{transform_indices = @transform_0, window_bounds = array<i64: 8, 32>}, {pipeline_mode = #tpu.pipeline_mode<synchronous>, transform_indices = @transform_1, window_bounds = array<i64: 152, 128>}, {transform_indices = @transform_2, window_bounds = array<i64: 8, 128>}]} {
    %c0 = arith.constant 0 : index
    %c0_0 = arith.constant 0 : index
    %0 = vector.load %arg1[%c0, %c0_0] : memref<8x32xbf16, #tpu.memory_space<vmem>>, vector<8x32xbf16>
    %c0_1 = arith.constant 0 : index
    %c0_2 = arith.constant 0 : index
    %1 = vector.load %arg2[%c0_1, %c0_2] : memref<152x128xbf16, #tpu.memory_space<vmem>>, vector<32x64xbf16>
    %c32 = arith.constant 32 : index
    %c0_3 = arith.constant 0 : index
    %2 = vector.load %arg2[%c32, %c0_3] : memref<152x128xbf16, #tpu.memory_space<vmem>>, vector<1x64xbf16>
    %3 = arith.extf %2 : vector<1x64xbf16> to vector<1x64xf32>
    %cst = arith.constant dense<0.000000e+00> : vector<8x64xf32>
    %4 = tpu.matmul %0, %1, %cst {dimension_numbers = #tpu.dot_dimension_numbers<[1], [0], [0], [1], [0, 0, 1, 1], [], []>} : vector<8x32xbf16>, vector<32x64xbf16>, vector<8x64xf32> -> vector<8x64xf32>
    %5 = vector.broadcast %3 : vector<1x64xf32> to vector<8x64xf32>
    %6 = arith.addf %4, %5 : vector<8x64xf32>
    %cst_4 = arith.constant 0.000000e+00 : f32
    %7 = vector.broadcast %cst_4 : f32 to vector<8x64xf32>
    %8 = arith.maximumf %6, %7 : vector<8x64xf32>
    %9 = arith.truncf %8 : vector<8x64xf32> to vector<8x64xbf16>
    %c40 = arith.constant 40 : index
    %c0_5 = arith.constant 0 : index
    %10 = vector.load %arg2[%c40, %c0_5] : memref<152x128xbf16, #tpu.memory_space<vmem>>, vector<64x32xbf16>
    %c104 = arith.constant 104 : index
    %c0_6 = arith.constant 0 : index
    %11 = vector.load %arg2[%c104, %c0_6] : memref<152x128xbf16, #tpu.memory_space<vmem>>, vector<1x32xbf16>
    %12 = arith.extf %11 : vector<1x32xbf16> to vector<1x32xf32>
    %cst_7 = arith.constant dense<0.000000e+00> : vector<8x32xf32>
    %13 = tpu.matmul %9, %10, %cst_7 {dimension_numbers = #tpu.dot_dimension_numbers<[1], [0], [0], [1], [0, 0, 1, 1], [], []>} : vector<8x64xbf16>, vector<64x32xbf16>, vector<8x32xf32> -> vector<8x32xf32>
    %14 = vector.broadcast %12 : vector<1x32xf32> to vector<8x32xf32>
    %15 = arith.addf %13, %14 : vector<8x32xf32>
    %cst_8 = arith.constant 0.000000e+00 : f32
    %16 = vector.broadcast %cst_8 : f32 to vector<8x32xf32>
    %17 = arith.maximumf %15, %16 : vector<8x32xf32>
    %18 = arith.truncf %17 : vector<8x32xf32> to vector<8x32xbf16>
    %c112 = arith.constant 112 : index
    %c0_9 = arith.constant 0 : index
    %19 = vector.load %arg2[%c112, %c0_9] : memref<152x128xbf16, #tpu.memory_space<vmem>>, vector<32x128xbf16>
    %c144 = arith.constant 144 : index
    %c0_10 = arith.constant 0 : index
    %20 = vector.load %arg2[%c144, %c0_10] : memref<152x128xbf16, #tpu.memory_space<vmem>>, vector<1x128xbf16>
    %21 = arith.extf %20 : vector<1x128xbf16> to vector<1x128xf32>
    %cst_11 = arith.constant dense<0.000000e+00> : vector<8x128xf32>
    %22 = tpu.matmul %18, %19, %cst_11 {dimension_numbers = #tpu.dot_dimension_numbers<[1], [0], [0], [1], [0, 0, 1, 1], [], []>} : vector<8x32xbf16>, vector<32x128xbf16>, vector<8x128xf32> -> vector<8x128xf32>
    %23 = vector.broadcast %21 : vector<1x128xf32> to vector<8x128xf32>
    %24 = arith.addf %22, %23 : vector<8x128xf32>
    %cst_12 = arith.constant dense<0xFF800000> : vector<8xf32>
    %25 = vector.multi_reduction <maximumf>, %24, %cst_12 [1] : vector<8x128xf32> to vector<8xf32>
    %26 = vector.shape_cast %25 : vector<8xf32> to vector<8x1xf32>
    %27 = vector.broadcast %26 : vector<8x1xf32> to vector<8x128xf32>
    %28 = arith.subf %24, %27 : vector<8x128xf32>
    %29 = math.exp %28 : vector<8x128xf32>
    %cst_13 = arith.constant dense<0.000000e+00> : vector<8xf32>
    %30 = vector.multi_reduction <add>, %29, %cst_13 [1] : vector<8x128xf32> to vector<8xf32>
    %31 = vector.shape_cast %30 : vector<8xf32> to vector<8x1xf32>
    %32 = tpu.reciprocal %31 {approx = true} : vector<8x1xf32> -> vector<8x1xf32>
    %33 = vector.broadcast %32 : vector<8x1xf32> to vector<8x128xf32>
    %34 = arith.mulf %29, %33 : vector<8x128xf32>
    %c0_14 = arith.constant 0 : index
    %c0_15 = arith.constant 0 : index
    %35 = vector.load %arg3[%c0_14, %c0_15] : memref<8x128xf32, #tpu.memory_space<vmem>>, vector<8x128xf32>
    tpu.vector_store %arg3[%c0_14, %c0_15], %34 {strides = array<i32>} : memref<8x128xf32, #tpu.memory_space<vmem>>, vector<8x128xf32>,
    return
  }
  func.func @transform_0(%arg0: i32) -> (i32, i32) {
    %c0_i32 = arith.constant 0 : i32
    %c0_i32_0 = arith.constant 0 : i32
    return %arg0, %c0_i32 : i32, i32
  }
  func.func @transform_1(%arg0: i32) -> (i32, i32) {
    %c0_i32 = arith.constant 0 : i32
    %c0_i32_0 = arith.constant 0 : i32
    %c0_i32_1 = arith.constant 0 : i32
    return %c0_i32, %c0_i32_0 : i32, i32
  }
  func.func @transform_2(%arg0: i32) -> (i32, i32) {
    %c0_i32 = arith.constant 0 : i32
    %c0_i32_0 = arith.constant 0 : i32
    return %arg0, %c0_i32 : i32, i32
  }
}

</mosaic_0001>

<llo_original>
// kernel: tpu_custom_call.1
$region0: #{tpu_custom_call.1}
  #allocation0 [shape = 'u32[]', space=smem, size = 0x4, offset = 0x4, fixed_abs, tag = 'smem constant byte address 0x4 - core index']
  #allocation1 [shape = 'u32[144,128]{1,0:T(1,128)}', space=vmem, size = 0x12000, scoped, tag = 'internal scratch']
  %s0 = inlined_call_operand.hbm [shape: bf16[8,32], index: 0, kind: input, shape index: {}]
  %s1 = inlined_call_operand.hbm [shape: bf16[152,128], index: 1, kind: input, shape index: {}]
  %s2 = inlined_call_operand.hbm [shape: f32[8,128], index: 2, kind: output, shape index: {}]
  %s3 = sld [smem:[#allocation0]]
  $region26: #{tpu_custom_call.1} parent=0
    _
  %s5 = ssub.s32 1, %s3
  %s6 = scalar_select 0, %s5, %s3
  $region1: #{tpu_custom_call.1} parent=0
    #allocation2 [shape = 'u8[2048]{0}', space=vmem, size = 0x800, scoped, tag = 'input window, operand 0, single buffered']
    #allocation3 [shape = 's32[1]{0}', space=sflag, size = 0x4, scoped, tag = 'scoped memory for tpu_custom_call.1']
    #allocation4 [shape = 's32[1]{0}', space=sflag, size = 0x4, scoped, tag = 'scoped memory for tpu_custom_call.1']
    #allocation5 [shape = 'u8[38912]{0}', space=vmem, size = 0x9800, scoped, tag = 'input window, operand 1, single buffered']
    #allocation6 [shape = 's32[1]{0}', space=sflag, size = 0x4, scoped, tag = 'scoped memory for tpu_custom_call.1']
    #allocation7 [shape = 'u8[4096]{0}', space=vmem, size = 0x1000, scoped, tag = 'output window, operand 0, single buffered']
    %7 = vsyncpa [#allocation3], 0
    %8 = vsyncpa [#allocation6], 0
    %9 = vsyncpa [#allocation4], 0
    // Predicated region
    $region2: #{tpu_custom_call.1} parent=1 // pred_check
      _
    $region3: #{tpu_custom_call.1} parent=1 // pred_check_branch
      %11 = sbr.rel (0) target = $region5
    $region4: #{tpu_custom_call.1} parent=1 // pred_region
      %s13 = ssub.s32 64, 64
      %14 = vsyncadd [#allocation3], %s13
      %s16 = sshll.u32 [#allocation2], 4
      %s17 = int_to_ptr.vmem [resolvable:$true] %s16
      %19 = dma.hbm_to_vmem [thread:$0]  %s0, 64, %s17, [#allocation3]
    $region5: #{tpu_custom_call.1} parent=1 // pred_fallthru
      _
    // Predicated region
    $region6: #{tpu_custom_call.1} parent=1 // pred_check
      _
    $region7: #{tpu_custom_call.1} parent=1 // pred_check_branch
      %21 = sbr.rel (0) target = $region9
    $region8: #{tpu_custom_call.1} parent=1 // pred_region
      %s23 = ssub.s32 1216, 1216
      %24 = vsyncadd [#allocation6], %s23
      %s25 = sshll.u32 [#allocation5], 4
      %s26 = int_to_ptr.vmem [resolvable:$true] %s25
      %31 = dma.hbm_to_vmem [thread:$0]  %s1, 1216, %s26, [#allocation6], 64, 64, 4
    $region9: #{tpu_custom_call.1} parent=1 // pred_fallthru
      _
    // Predicated region
    $region10: #{tpu_custom_call.1} parent=1 // pred_check
      _
    $region11: #{tpu_custom_call.1} parent=1 // pred_check_branch
      %33 = sbr.rel (0) target = $region13
    $region12: #{tpu_custom_call.1} parent=1 // pred_region
      %34 = dma.done [#allocation3], 64
    $region13: #{tpu_custom_call.1} parent=1 // pred_fallthru
      _
    // Predicated region
    $region14: #{tpu_custom_call.1} parent=1 // pred_check
      _
    $region15: #{tpu_custom_call.1} parent=1 // pred_check_branch
      %36 = sbr.rel (0) target = $region17
    $region16: #{tpu_custom_call.1} parent=1 // pred_region
      %37 = dma.done [#allocation6], 1216
    $region17: #{tpu_custom_call.1} parent=1 // pred_fallthru
      _
    %v39 = vld [vmem:[#allocation2] sm:$0xf]
    %v40 = vld [vmem:[#allocation5] sm:$0xf]
    %v41 = vld [vmem:[#allocation5 + $0x4] sm:$0xf]
    %v42 = vld [vmem:[#allocation5 + $0x8] sm:$0xf]
    %v43 = vld [vmem:[#allocation5 + $0xc] sm:$0xf]
    %v44 = vld [vmem:[#allocation5 + $0x10] sm:$0x1]
    %v45 = vunpack.c.l.bf16 %v44
    %v46 = vlaneseq
    %v47 = vshrl.u32 %v46, 7
    %v48 = vsub.s32 0, %v47
    %v49 = vrot.slane %v45, %v48
    %v54 = vunpack.c.l.b16 %v40
    %v55 = vunpack.c.l.b16 %v41
    %v56 = vunpack.c.l.b16 %v42
    %v57 = vunpack.c.l.b16 %v43
    %v58 = vpack.c.b16 %v55, %v54
    %v59 = vpack.c.b16 %v57, %v56
    %vm62 = vcmask 261120
    %v64 = vsel %vm62, %v39, 0
    %66 = vmatprep.subr.bf16.mxu0 0
    %67 = vmatpush1.bf16.msra.mxu0 %v58
    %68 = vmatprep.subr.bf16.mxu0 0
    %69 = vmatpush1.bf16.msra.mxu0 %v59
    %70 = vmatprep.subr.bf16.mxu0 0
    %71 = vmatpush1.bf16.msra.mxu0 0
    %72 = vmatprep.subr.bf16.mxu0 0
    %73 = vmatpush1.bf16.msra.mxu0 0
    %74 = vmatprep.subr.bf16.mxu0 0
    %75 = vmatpush1.bf16.msra.mxu0 0
    %76 = vmatprep.subr.bf16.mxu0 0
    %77 = vmatpush1.bf16.msra.mxu0 0
    %78 = vmatprep.subr.bf16.mxu0 0
    %79 = vmatpush1.bf16.msra.mxu0 0
    %80 = vmatprep.subr.bf16.mxu0 0
    %81 = vmatpush1.bf16.msra.mxu0 0
    %82 = vmatprep.subr.bf16.mxu0 0
    %83 = vmatpush1.bf16.msra.mxu0 0
    %84 = vmatprep.subr.bf16.mxu0 0
    %85 = vmatpush1.bf16.msra.mxu0 0
    %86 = vmatprep.subr.bf16.mxu0 0
    %87 = vmatpush1.bf16.msra.mxu0 0
    %88 = vmatprep.subr.bf16.mxu0 0
    %89 = vmatpush1.bf16.msra.mxu0 0
    %90 = vmatprep.subr.bf16.mxu0 0
    %91 = vmatpush1.bf16.msra.mxu0 0
    %92 = vmatprep.subr.bf16.mxu0 0
    %93 = vmatpush1.bf16.msra.mxu0 0
    %94 = vmatprep.subr.bf16.mxu0 0
    %95 = vmatpush1.bf16.msra.mxu0 0
    %96 = vmatprep.subr.bf16.mxu0 0
    %97 = vmatpush1.bf16.msra.mxu0 0
    %98 = vmatprep.mubr.bf16.mxu0 0
    %99 = vmatmul.mubr.bf16.gmra.mrb[0].mxu0 %v64
    %v100 = vpop.f32.mrb[0].mxu0
    %v101 = vadd.f32 %v49, %v100
    %v102 = vpop.f32.mrb[0].mxu0
    %v103 = vpop.f32.mrb[0].mxu0
    %v104 = vpop.f32.mrb[0].mxu0
    %105 = vdwg.mxu0
    %v106 = vmax.f32 %v101, 0.0
    %v107 = vpack.c.bf16 %v106, %v106
    %v108 = vld [vmem:[#allocation5 + $0x14] sm:$0xf]
    %v109 = vld [vmem:[#allocation5 + $0x18] sm:$0xf]
    %v110 = vld [vmem:[#allocation5 + $0x1c] sm:$0xf]
    %v111 = vld [vmem:[#allocation5 + $0x20] sm:$0xf]
    %v112 = vld [vmem:[#allocation5 + $0x24] sm:$0xf]
    %v113 = vld [vmem:[#allocation5 + $0x28] sm:$0xf]
    %v114 = vld [vmem:[#allocation5 + $0x2c] sm:$0xf]
    %v115 = vld [vmem:[#allocation5 + $0x30] sm:$0xf]
    %v116 = vld [vmem:[#allocation5 + $0x34] sm:$0x1]
    %v117 = vunpack.c.l.bf16 %v116
    %v118 = vlaneseq
    %v119 = vshrl.u32 %v118, 7
    %v120 = vsub.s32 0, %v119
    %v121 = vrot.slane %v117, %v120
    %v130 = vunpack.c.l.b16 %v108
    %v131 = vunpack.c.l.b16 %v109
    %v132 = vunpack.c.l.b16 %v110
    %v133 = vunpack.c.l.b16 %v111
    %v134 = vunpack.c.l.b16 %v112
    %v135 = vunpack.c.l.b16 %v113
    %v136 = vunpack.c.l.b16 %v114
    %v137 = vunpack.c.l.b16 %v115
    %v138 = vpack.c.b16 %v131, %v130
    %v139 = vpack.c.b16 %v133, %v132
    %v140 = vpack.c.b16 %v135, %v134
    %v141 = vpack.c.b16 %v137, %v136
    %vm146 = vcmask 523264
    %v148 = vsel %vm146, %v107, 0
    %150 = vmatprep.subr.bf16.mxu0 0
    %151 = vmatpush1.bf16.msra.mxu0 %v138
    %152 = vmatprep.subr.bf16.mxu0 0
    %153 = vmatpush1.bf16.msra.mxu0 %v139
    %154 = vmatprep.subr.bf16.mxu0 0
    %155 = vmatpush1.bf16.msra.mxu0 %v140
    %156 = vmatprep.subr.bf16.mxu0 0
    %157 = vmatpush1.bf16.msra.mxu0 %v141
    %158 = vmatprep.subr.bf16.mxu0 0
    %159 = vmatpush1.bf16.msra.mxu0 0
    %160 = vmatprep.subr.bf16.mxu0 0
    %161 = vmatpush1.bf16.msra.mxu0 0
    %162 = vmatprep.subr.bf16.mxu0 0
    %163 = vmatpush1.bf16.msra.mxu0 0
    %164 = vmatprep.subr.bf16.mxu0 0
    %165 = vmatpush1.bf16.msra.mxu0 0
    %166 = vmatprep.subr.bf16.mxu0 0
    %167 = vmatpush1.bf16.msra.mxu0 0
    %168 = vmatprep.subr.bf16.mxu0 0
    %169 = vmatpush1.bf16.msra.mxu0 0
    %170 = vmatprep.subr.bf16.mxu0 0
    %171 = vmatpush1.bf16.msra.mxu0 0
    %172 = vmatprep.subr.bf16.mxu0 0
    %173 = vmatpush1.bf16.msra.mxu0 0
    %174 = vmatprep.subr.bf16.mxu0 0
    %175 = vmatpush1.bf16.msra.mxu0 0
    %176 = vmatprep.subr.bf16.mxu0 0
    %177 = vmatpush1.bf16.msra.mxu0 0
    %178 = vmatprep.subr.bf16.mxu0 0
    %179 = vmatpush1.bf16.msra.mxu0 0
    %180 = vmatprep.subr.bf16.mxu0 0
    %181 = vmatpush1.bf16.msra.mxu0 0
    %182 = vmatprep.mubr.bf16.mxu0 0
    %183 = vmatmul.mubr.bf16.gmra.mrb[0].mxu0 %v148
    %v184 = vpop.f32.mrb[0].mxu0
    %v185 = vadd.f32 %v121, %v184
    %v186 = vpop.f32.mrb[0].mxu0
    %v187 = vpop.f32.mrb[0].mxu0
    %v188 = vpop.f32.mrb[0].mxu0
    %189 = vdwg.mxu0
    %v190 = vmax.f32 %v185, 0.0
    %v191 = vpack.c.bf16 %v190, %v190
    %v192 = vld [vmem:[#allocation5 + $0x38] sm:$0xf]
    %v193 = vld [vmem:[#allocation5 + $0x3c] sm:$0xf]
    %v194 = vld [vmem:[#allocation5 + $0x40] sm:$0xf]
    %v195 = vld [vmem:[#allocation5 + $0x44] sm:$0xf]
    %v196 = vld [vmem:[#allocation5 + $0x48] sm:$0x1]
    %v197 = vunpack.c.l.bf16 %v196
    %v198 = vlaneseq
    %v199 = vshrl.u32 %v198, 7
    %v200 = vsub.s32 0, %v199
    %v201 = vrot.slane %v197, %v200
    %v206 = vunpack.c.l.b16 %v192
    %v207 = vunpack.c.l.b16 %v193
    %v208 = vunpack.c.l.b16 %v194
    %v209 = vunpack.c.l.b16 %v195
    %v210 = vpack.c.b16 %v207, %v206
    %v211 = vpack.c.b16 %v209, %v208
    %v215 = vsel %vm62, %v191, 0
    %217 = vmatprep.subr.bf16.mxu0 0
    %218 = vmatpush1.bf16.msra.mxu0 %v210
    %219 = vmatprep.subr.bf16.mxu0 0
    %220 = vmatpush1.bf16.msra.mxu0 %v211
    %221 = vmatprep.subr.bf16.mxu0 0
    %222 = vmatpush1.bf16.msra.mxu0 0
    %223 = vmatprep.subr.bf16.mxu0 0
    %224 = vmatpush1.bf16.msra.mxu0 0
    %225 = vmatprep.subr.bf16.mxu0 0
    %226 = vmatpush1.bf16.msra.mxu0 0
    %227 = vmatprep.subr.bf16.mxu0 0
    %228 = vmatpush1.bf16.msra.mxu0 0
    %229 = vmatprep.subr.bf16.mxu0 0
    %230 = vmatpush1.bf16.msra.mxu0 0
    %231 = vmatprep.subr.bf16.mxu0 0
    %232 = vmatpush1.bf16.msra.mxu0 0
    %233 = vmatprep.subr.bf16.mxu0 0
    %234 = vmatpush1.bf16.msra.mxu0 0
    %235 = vmatprep.subr.bf16.mxu0 0
    %236 = vmatpush1.bf16.msra.mxu0 0
    %237 = vmatprep.subr.bf16.mxu0 0
    %238 = vmatpush1.bf16.msra.mxu0 0
    %239 = vmatprep.subr.bf16.mxu0 0
    %240 = vmatpush1.bf16.msra.mxu0 0
    %241 = vmatprep.subr.bf16.mxu0 0
    %242 = vmatpush1.bf16.msra.mxu0 0
    %243 = vmatprep.subr.bf16.mxu0 0
    %244 = vmatpush1.bf16.msra.mxu0 0
    %245 = vmatprep.subr.bf16.mxu0 0
    %246 = vmatpush1.bf16.msra.mxu0 0
    %247 = vmatprep.subr.bf16.mxu0 0
    %248 = vmatpush1.bf16.msra.mxu0 0
    %249 = vmatprep.mubr.bf16.mxu0 0
    %250 = vmatmul.mubr.bf16.gmra.mrb[0].mxu0 %v215
    %v251 = vpop.f32.mrb[0].mxu0
    %v252 = vadd.f32 %v201, %v251
    %v253 = vpop.f32.mrb[0].mxu0
    %v254 = vpop.f32.mrb[0].mxu0
    %v255 = vpop.f32.mrb[0].mxu0
    %256 = vdwg.mxu0
    %257 = vmax.xlane.f32.xlu0 %v252
    %v258 = vpop.xlane.xlu0 %257
    %v259 = vsub.f32 %v252, %v258
    %v260 = vmul.f32 %v259, 1.442695
    %v261 = vpow.pop %v260
    %262 = vadd.xlane.f32.xlu0 %v261
    %v263 = vpop.xlane.xlu0 %262
    %v264 = vrcp.pop %v263
    %v265 = vmul.f32 %v261, %v264
    %266 = vst [vmem:[#allocation7] sm:$0xff] %v265
    // Predicated region
    $region18: #{tpu_custom_call.1} parent=1 // pred_check
      _
    $region19: #{tpu_custom_call.1} parent=1 // pred_check_branch
      %268 = sbr.rel (0) target = $region21
    $region20: #{tpu_custom_call.1} parent=1 // pred_region
      %s270 = ssub.s32 128, 128
      %271 = vsyncadd [#allocation4], %s270
      %s273 = sshll.u32 [#allocation7], 4
      %s274 = int_to_ptr.vmem [resolvable:$true] %s273
      %276 = dma.vmem_to_hbm [thread:$0]  %s274, 128, %s2, [#allocation4]
    $region21: #{tpu_custom_call.1} parent=1 // pred_fallthru
      _
    // Predicated region
    $region22: #{tpu_custom_call.1} parent=1 // pred_check
      _
    $region23: #{tpu_custom_call.1} parent=1 // pred_check_branch
      %278 = sbr.rel (0) target = $region25
    $region24: #{tpu_custom_call.1} parent=1 // pred_region
      %279 = dma.done [#allocation4], 128
    $region25: #{tpu_custom_call.1} parent=1 // pred_fallthru
      _
    %280 = vsyncpa [#allocation3], 1
    %281 = vsyncpa [#allocation6], 1
    %282 = vsyncpa [#allocation4], 1

</llo_original>
